<compile_context>
chip_gen: v7x
topology: tpu7x:2x2x1
jax: 0.10.0
libtpu: 0.0.40
codegen_flags: <defaults>
</compile_context>

<pallas_src>
import jax
import jax.numpy as jnp
from jax.experimental import pallas as pl
from jax.experimental.pallas import tpu as pltpu


# ---------------------------------------------------------------------------
# Kernels
# ---------------------------------------------------------------------------

def _passthrough_kernel(x_ref, o_ref):
    # Zero-copy: the output HBM buffer is aliased onto the input buffer via
    # input_output_aliases={0: 0}, so nothing has to move.  touch() pins a
    # fake read/write dependency so the aliased output counts as produced here.
    del x_ref
    pltpu.touch(o_ref)


def _copy_kernel(x_ref, o_ref):
    # Lane-dense identity copy: the block's last dim is either a multiple of
    # 128 or the full row width -> unmasked vector stores, no relayout.
    o_ref[...] = x_ref[...]


# ---------------------------------------------------------------------------
# Tiling helpers (copy path)
# ---------------------------------------------------------------------------

_TARGET_BLOCK_BYTES = 8 << 20   # ~8 MiB blocks: ~5% step overhead at v7x HBM BW
_VMEM_LIMIT_BYTES = 48 << 20    # 32 MiB of double-buffered tiles + headroom,
                                # still under v7x's 64 MiB physical VMEM


def _sublane_multiple(itemsize: int) -> int:
    # 32-bit -> 8 sublanes, 16-bit -> 16, 8-bit -> 32 (packed dtypes).
    return max(8, 32 // max(1, itemsize))


def _pick_slab(shape):
    """Choose a lane-dense 2-D view (R, W) of the flattened, contiguous input."""
    total = 1
    for d in shape:
        total *= d
    # Prefer a wide last dim that is a multiple of 128 (full lane utilization).
    for w in (2048, 1024, 512, 256, 128):
        if total % w == 0:
            return total // w, w
    # Fall back to the natural (leading dims flattened, last dim) layout.
    if len(shape) == 1:
        return 1, shape[0]
    return total // shape[-1], shape[-1]


def _identity_copy_2d(x2, R, W):
    itemsize = jnp.dtype(x2.dtype).itemsize
    sub = _sublane_multiple(itemsize)
    lane = 128

    # Lane tile: full width if a sublane-deep slice of it fits the byte
    # budget; otherwise a multiple of 128 (never shrink the row tile below
    # the sublane packing to compensate for very wide rows).
    if sub * W * itemsize <= _TARGET_BLOCK_BYTES:
        tw = W
    else:
        tw = max(lane, (_TARGET_BLOCK_BYTES // (sub * itemsize)) // lane * lane)

    # Row tile: fill the byte budget, rounded down to the sublane packing, or
    # take the full row count (always a legal block dim).
    tr = min(R, max(1, _TARGET_BLOCK_BYTES // max(1, tw * itemsize)))
    if tr < R:
        tr = max(sub, (tr // sub) * sub)
        if tr >= R:
            tr = R

    # Give v7x's two TensorCores at least two "parallel" steps to split when
    # everything would otherwise land in a single block.
    if pl.cdiv(R, tr) * pl.cdiv(W, tw) == 1 and R >= 2 * sub:
        half = -(-R // 2)                      # ceil(R / 2)
        tr = min(R, -(-half // sub) * sub)     # round up to sublane multiple

    grid = (pl.cdiv(R, tr), pl.cdiv(W, tw))

    return pl.pallas_call(
        _copy_kernel,
        out_shape=jax.ShapeDtypeStruct((R, W), x2.dtype),
        grid=grid,
        in_specs=[pl.BlockSpec((tr, tw), lambda i, j: (i, j))],
        out_specs=pl.BlockSpec((tr, tw), lambda i, j: (i, j)),
        compiler_params=pltpu.CompilerParams(
            dimension_semantics=("parallel", "parallel"),
            vmem_limit_bytes=_VMEM_LIMIT_BYTES,
        ),
        cost_estimate=pl.CostEstimate(
            flops=0, transcendentals=0, bytes_accessed=2 * R * W * itemsize),
    )(x2)


def _identity_passthrough(x):
    return pl.pallas_call(
        _passthrough_kernel,
        out_shape=jax.ShapeDtypeStruct(x.shape, x.dtype),
        in_specs=[pl.BlockSpec(memory_space=pl.ANY)],
        out_specs=pl.BlockSpec(memory_space=pl.ANY),
        input_output_aliases={0: 0},
    )(x)


# ---------------------------------------------------------------------------
# Public wrapper
# ---------------------------------------------------------------------------

def identity_embedding(x: jax.Array, *, zero_copy: bool = True) -> jax.Array:
    """Equivalent of IdentityEmbedding().forward(x): returns x[..., None]."""
    if x.ndim == 0:
        # unsqueeze(-1) of a scalar is purely a metadata reshape.
        return jnp.reshape(x, (1,))

    out_shape = x.shape + (1,)

    if zero_copy:
        # Preferred path: alias the output buffer onto the input (no HBM
        # traffic).  If this build rejects the aliased no-op kernel, fall
        # through to the tiled copy below.
        try:
            y = _identity_passthrough(x)
            return jnp.reshape(y, out_shape)          # free metadata reshape
        except Exception:                             # defensive fallback only
            pass

    R, W = _pick_slab(x.shape)
    x2 = jnp.reshape(x, (R, W))                       # free: contiguous reshape
    y2 = _identity_copy_2d(x2, R, W)
    return jnp.reshape(y2, out_shape)                 # the actual unsqueeze(-1)


if __name__ == "__main__":
    key = jax.random.PRNGKey(0)
    keys = jax.random.split(key, 4)

    # 4-D input (matches reported input_shapes) — both paths.
    x0 = jax.random.normal(keys[0], (2, 4, 16, 16), dtype=jnp.float32)
    for zc in (True, False):
        y0 = identity_embedding(x0, zero_copy=zc)
        jax.block_until_ready(y0)
        assert y0.shape == (2, 4, 16, 16, 1), (zc, y0.shape)
        assert y0.dtype == x0.dtype
        assert jnp.array_equal(y0, x0[..., None]), f"mismatch (4D, zero_copy={zc})"

    # 3-D input exercising the lane-dense slab path (last dim 16 < 128).
    x1 = jax.random.normal(keys[1], (2, 4, 16), dtype=jnp.float32)
    for zc in (True, False):
        y1 = identity_embedding(x1, zero_copy=zc)
        jax.block_until_ready(y1)
        assert y1.shape == (2, 4, 16, 1), (zc, y1.shape)
        assert y1.dtype == x1.dtype
        assert jnp.array_equal(y1, x1[..., None]), f"mismatch (3D, zero_copy={zc})"

    # Small 2-D case (total not divisible by 128 -> natural-layout fallback).
    x2 = jax.random.normal(keys[2], (2, 8), dtype=jnp.float32)
    for zc in (True, False):
        y2 = identity_embedding(x2, zero_copy=zc)
        jax.block_until_ready(y2)
        assert y2.shape == (2, 8, 1), (zc, y2.shape)
        assert y2.dtype == x2.dtype
        assert jnp.array_equal(y2, x2[..., None]), f"mismatch (2D, zero_copy={zc})"

    # bf16 input exercising the 16-sublane packing rule on the copy path.
    x3 = jax.random.normal(keys[3], (4, 32), dtype=jnp.bfloat16)
    y3 = identity_embedding(x3, zero_copy=False)
    jax.block_until_ready(y3)
    assert y3.shape == (4, 32, 1), y3.shape
    assert y3.dtype == x3.dtype
    assert jnp.array_equal(y3, x3[..., None]), "mismatch (bf16)"

    print("KERNEL_OK")
</pallas_src>

<mosaic_0001>
module attributes {stable_mosaic.version = 11 : i64} {
  func.func @_passthrough_kernel(%arg0: memref<2x4x16x16xf32, #tpu.memory_space<any>>, %arg1: memref<2x4x16x16xf32, #tpu.memory_space<any>>) attributes {dimension_semantics = [], scalar_prefetch = 0 : i64, scratch_operands = 0 : i64, tpu.core_type = #tpu.core_type<tc>} {
    return
  }
}

module attributes {stable_mosaic.version = 11 : i64} {
  func.func @_copy_kernel(%arg0: i32, %arg1: i32, %arg2: memref<1x2048xf32, #tpu.memory_space<vmem>>, %arg3: memref<1x2048xf32, #tpu.memory_space<vmem>>) attributes {dimension_semantics = [#tpu.dimension_semantics<parallel>, #tpu.dimension_semantics<parallel>], iteration_bounds = array<i64: 1, 1>, scalar_prefetch = 0 : i64, scratch_operands = 0 : i64, tpu.core_type = #tpu.core_type<tc>, window_params = [{transform_indices = @transform_0, window_bounds = array<i64: 1, 2048>}, {transform_indices = @transform_1, window_bounds = array<i64: 1, 2048>}]} {
    %c0 = arith.constant 0 : index
    %c0_0 = arith.constant 0 : index
    %0 = vector.load %arg2[%c0, %c0_0] : memref<1x2048xf32, #tpu.memory_space<vmem>>, vector<1x2048xf32>
    %c0_1 = arith.constant 0 : index
    %c0_2 = arith.constant 0 : index
    %1 = vector.load %arg3[%c0_1, %c0_2] : memref<1x2048xf32, #tpu.memory_space<vmem>>, vector<1x2048xf32>
    tpu.vector_store %arg3[%c0_1, %c0_2], %0 {strides = array<i32>} : memref<1x2048xf32, #tpu.memory_space<vmem>>, vector<1x2048xf32>,
    return
  }
  func.func @transform_0(%arg0: i32, %arg1: i32) -> (i32, i32) {
    %c0_i32 = arith.constant 0 : i32
    return %arg0, %arg1 : i32, i32
  }
  func.func @transform_1(%arg0: i32, %arg1: i32) -> (i32, i32) {
    %c0_i32 = arith.constant 0 : i32
    return %arg0, %arg1 : i32, i32
  }
}

</mosaic_0001>

<llo_original>
// kernel: tpu_custom_call.1
$region0: #{tpu_custom_call.1}
  #allocation0 [shape = 'u32[]', space=smem, size = 0x4, offset = 0x4, fixed_abs, tag = 'smem constant byte address 0x4 - core index']
  #allocation1 [shape = 'u32[144,128]{1,0:T(1,128)}', space=vmem, size = 0x12000, scoped, tag = 'internal scratch']
  %s0 = inlined_call_operand.hbm [shape: f32[2,4,16,16], index: 0, kind: input, shape index: {}, may-alias: {0,1}]
  %s1 = inlined_call_operand.hbm [shape: f32[2,4,16,16], index: 1, kind: output, shape index: {}, may-alias: {0,1}]
  %s2 = sld [smem:[#allocation0]]
  $region2: #{tpu_custom_call.1} parent=0
    _
  %s4 = ssub.s32 1, %s2
  %s5 = scalar_select 0, %s4, %s2

// kernel: tpu_custom_call.1
$region0: #{tpu_custom_call.1}
  #allocation0 [shape = 'u32[]', space=smem, size = 0x4, offset = 0x4, fixed_abs, tag = 'smem constant byte address 0x4 - core index']
  #allocation1 [shape = 'u32[144,128]{1,0:T(1,128)}', space=vmem, size = 0x12000, scoped, tag = 'internal scratch']
  %s0 = inlined_call_operand.hbm [shape: f32[1,2048], index: 0, kind: input, shape index: {}]
  %s1 = inlined_call_operand.hbm [shape: f32[1,2048], index: 1, kind: output, shape index: {}]
  %s2 = sld [smem:[#allocation0]]
  $region18: #{tpu_custom_call.1} parent=0
    _
  %s4 = ssub.s32 1, %s2
  %s5 = scalar_select 0, %s4, %s2
  $region1: #{tpu_custom_call.1} parent=0
    #allocation2 [shape = 'u8[8192]{0}', space=vmem, size = 0x2000, scoped, tag = 'input window, operand 0, single buffered']
    #allocation3 [shape = 's32[1]{0}', space=sflag, size = 0x4, scoped, tag = 'scoped memory for tpu_custom_call.1']
    #allocation4 [shape = 's32[1]{0}', space=sflag, size = 0x4, scoped, tag = 'scoped memory for tpu_custom_call.1']
    #allocation5 [shape = 'u8[8192]{0}', space=vmem, size = 0x2000, scoped, tag = 'output window, operand 0, single buffered']
    %6 = vsyncpa [#allocation3], 0
    %7 = vsyncpa [#allocation4], 0
    // Predicated region
    $region2: #{tpu_custom_call.1} parent=1 // pred_check
      _
    $region3: #{tpu_custom_call.1} parent=1 // pred_check_branch
      %9 = sbr.rel (0) target = $region5
    $region4: #{tpu_custom_call.1} parent=1 // pred_region
      %s11 = ssub.s32 256, 256
      %12 = vsyncadd [#allocation3], %s11
      %s14 = sshll.u32 [#allocation2], 4
      %s15 = int_to_ptr.vmem [resolvable:$true] %s14
      %17 = dma.hbm_to_vmem [thread:$0]  %s0, 256, %s15, [#allocation3]
    $region5: #{tpu_custom_call.1} parent=1 // pred_fallthru
      _
    // Predicated region
    $region6: #{tpu_custom_call.1} parent=1 // pred_check
      _
    $region7: #{tpu_custom_call.1} parent=1 // pred_check_branch
      %19 = sbr.rel (0) target = $region9
    $region8: #{tpu_custom_call.1} parent=1 // pred_region
      %20 = dma.done [#allocation3], 256
    $region9: #{tpu_custom_call.1} parent=1 // pred_fallthru
      _
    %v21 = vld [vmem:[#allocation2] sm:$0xff]
    %v22 = vld [vmem:[#allocation2 + $0x8] sm:$0xff]
    %23 = vst [vmem:[#allocation5] sm:$0xff] %v21
    %24 = vst [vmem:[#allocation5 + $0x8] sm:$0xff] %v22
    // Predicated region
    $region10: #{tpu_custom_call.1} parent=1 // pred_check
      _
    $region11: #{tpu_custom_call.1} parent=1 // pred_check_branch
      %26 = sbr.rel (0) target = $region13
    $region12: #{tpu_custom_call.1} parent=1 // pred_region
      %s28 = ssub.s32 256, 256
      %29 = vsyncadd [#allocation4], %s28
      %s31 = sshll.u32 [#allocation5], 4
      %s32 = int_to_ptr.vmem [resolvable:$true] %s31
      %34 = dma.vmem_to_hbm [thread:$0]  %s32, 256, %s1, [#allocation4]
    $region13: #{tpu_custom_call.1} parent=1 // pred_fallthru
      _
    // Predicated region
    $region14: #{tpu_custom_call.1} parent=1 // pred_check
      _
    $region15: #{tpu_custom_call.1} parent=1 // pred_check_branch
      %36 = sbr.rel (0) target = $region17
    $region16: #{tpu_custom_call.1} parent=1 // pred_region
      %37 = dma.done [#allocation4], 256
    $region17: #{tpu_custom_call.1} parent=1 // pred_fallthru
      _
    %38 = vsyncpa [#allocation3], 1
    %39 = vsyncpa [#allocation4], 1

</llo_original>
